<compile_context>
chip_gen: v7x
topology: tpu7x:2x2x1
jax: 0.10.0
libtpu: 0.0.40
codegen_flags: <defaults>
</compile_context>

<pallas_src>
import jax
import jax.numpy as jnp
from jax.experimental import pallas as pl
from jax.experimental.pallas import tpu as pltpu

STATE_SIZE = 4
ACTION_SIZE = 2
H1 = 420
H2 = 130

# Lane-aligned (padded) widths used inside the kernel.
H1_P = 512
H2_P = 256
OUT_P = 128


def dqn_kernel(x_ref, w1_ref, b1_ref, w2_ref, b2_ref, w3_ref, b3_ref, o_ref):
    x = x_ref[...]                                    # (TB, 4)   f32
    w1 = w1_ref[...].astype(jnp.float32)              # (4, 512)  bf16 -> f32

    # ---- fc1: K=4 contraction as 4 VPU broadcast FMAs (skip the MXU) ----
    h1 = jnp.broadcast_to(b1_ref[...], (x.shape[0], w1.shape[1]))
    for k in range(STATE_SIZE):
        h1 = h1 + x[:, k:k + 1] * w1[k:k + 1, :]
    h1 = jnp.maximum(h1, 0.0)

    # ---- fc2: bf16 MXU matmul, f32 accumulation / elementwise ----
    h2 = jnp.dot(h1.astype(jnp.bfloat16), w2_ref[...],
                 preferred_element_type=jnp.float32)
    h2 = jnp.maximum(h2 + b2_ref[...], 0.0)

    # ---- out: bf16 MXU matmul into a lane-dense (TB, 128) output ----
    out = jnp.dot(h2.astype(jnp.bfloat16), w3_ref[...],
                  preferred_element_type=jnp.float32)
    o_ref[...] = (out + b3_ref[...]).astype(o_ref.dtype)


def prepare_params(params):
    """Zero-pad to lane-aligned widths; store weights as bf16, biases f32."""
    w1, b1, w2, b2, w3, b3 = params

    def pad2(a, shape):
        return jnp.zeros(shape, a.dtype).at[:a.shape[0], :a.shape[1]].set(a)

    w1p = pad2(w1, (STATE_SIZE, H1_P)).astype(jnp.bfloat16)
    b1p = pad2(b1, (1, H1_P))
    w2p = pad2(w2, (H1_P, H2_P)).astype(jnp.bfloat16)
    b2p = pad2(b2, (1, H2_P))
    w3p = pad2(w3, (H2_P, OUT_P)).astype(jnp.bfloat16)
    b3p = pad2(b3, (1, OUT_P))
    return (w1p, b1p, w2p, b2p, w3p, b3p)


def dqn_forward(x, padded_params, *, block_batch=256):
    w1p, b1p, w2p, b2p, w3p, b3p = padded_params
    B = x.shape[0]

    # Batch tile: sublane-aligned, capped at block_batch rows per grid step.
    tb = min(block_batch, pl.cdiv(B, 8) * 8)
    tb = pl.cdiv(tb, 8) * 8
    bp = pl.cdiv(B, tb) * tb
    if bp != B:
        x = jnp.zeros((bp, x.shape[1]), x.dtype).at[:B].set(x)

    const = lambda a: pl.BlockSpec(a.shape, lambda i: (0, 0))
    out = pl.pallas_call(
        dqn_kernel,
        out_shape=jax.ShapeDtypeStruct((bp, OUT_P), jnp.float32),
        grid=(bp // tb,),
        in_specs=[
            pl.BlockSpec((tb, STATE_SIZE), lambda i: (i, 0)),
            const(w1p), const(b1p), const(w2p), const(b2p),
            const(w3p), const(b3p),
        ],
        out_specs=pl.BlockSpec((tb, OUT_P), lambda i: (i, 0)),
        compiler_params=pltpu.CompilerParams(
            dimension_semantics=("parallel",)),
    )(x, w1p, b1p, w2p, b2p, w3p, b3p)
    return out[:B, :ACTION_SIZE]


def init_params(key):
    # Deterministic synthetic init mimicking nn.Linear's U(-1/sqrt(fan_in), +)
    ks = jax.random.split(key, 6)

    def lin(kw, kb, fan_in, fan_out):
        bound = 1.0 / jnp.sqrt(fan_in)
        w = jax.random.uniform(kw, (fan_in, fan_out), jnp.float32, -bound, bound)
        b = jax.random.uniform(kb, (1, fan_out), jnp.float32, -bound, bound)
        return w, b

    w1, b1 = lin(ks[0], ks[1], STATE_SIZE, H1)
    w2, b2 = lin(ks[2], ks[3], H1, H2)
    w3, b3 = lin(ks[4], ks[5], H2, ACTION_SIZE)
    return (w1, b1, w2, b2, w3, b3)


def reference_forward_f32(x, params):
    w1, b1, w2, b2, w3, b3 = params
    h1 = jnp.maximum(x @ w1 + b1, 0.0)
    h2 = jnp.maximum(h1 @ w2 + b2, 0.0)
    return h2 @ w3 + b3


def reference_forward_bf16(x, params):
    # Mirrors the kernel's precision: bf16 weights / matmul inputs,
    # f32 accumulation and elementwise math.
    w1, b1, w2, b2, w3, b3 = params
    w1b = w1.astype(jnp.bfloat16).astype(jnp.float32)
    h1 = b1
    for k in range(STATE_SIZE):
        h1 = h1 + x[:, k:k + 1] * w1b[k:k + 1, :]
    h1 = jnp.maximum(h1, 0.0)
    h2 = jnp.dot(h1.astype(jnp.bfloat16), w2.astype(jnp.bfloat16),
                 preferred_element_type=jnp.float32)
    h2 = jnp.maximum(h2 + b2, 0.0)
    out = jnp.dot(h2.astype(jnp.bfloat16), w3.astype(jnp.bfloat16),
                  preferred_element_type=jnp.float32)
    return out + b3


if __name__ == "__main__":
    key = jax.random.PRNGKey(0)
    kx, kp = jax.random.split(key)
    batch = 8
    x = jax.random.normal(kx, (batch, STATE_SIZE), jnp.float32)
    params = init_params(kp)
    padded = prepare_params(params)

    out = jax.block_until_ready(dqn_forward(x, padded))
    assert out.shape == (batch, ACTION_SIZE)

    ref_bf16 = reference_forward_bf16(x, params)   # same precision as kernel
    ref_f32 = reference_forward_f32(x, params)     # pure f32 semantics check
    assert jnp.allclose(out, ref_bf16, atol=2e-3, rtol=2e-3)
    assert jnp.allclose(out, ref_f32, atol=5e-2, rtol=5e-2)
    print("KERNEL_OK")
</pallas_src>

<mosaic_0001>
module attributes {stable_mosaic.version = 11 : i64} {
  func.func @dqn_kernel(%arg0: i32, %arg1: memref<8x4xf32, #tpu.memory_space<vmem>>, %arg2: memref<4x512xbf16, #tpu.memory_space<vmem>>, %arg3: memref<1x512xf32, #tpu.memory_space<vmem>>, %arg4: memref<512x256xbf16, #tpu.memory_space<vmem>>, %arg5: memref<1x256xf32, #tpu.memory_space<vmem>>, %arg6: memref<256x128xbf16, #tpu.memory_space<vmem>>, %arg7: memref<1x128xf32, #tpu.memory_space<vmem>>, %arg8: memref<8x128xf32, #tpu.memory_space<vmem>>) attributes {dimension_semantics = [#tpu.dimension_semantics<parallel>], iteration_bounds = array<i64: 1>, scalar_prefetch = 0 : i64, scratch_operands = 0 : i64, tpu.core_type = #tpu.core_type<tc>, window_params = [{transform_indices = @transform_0, window_bounds = array<i64: 8, 4>}, {pipeline_mode = #tpu.pipeline_mode<synchronous>, transform_indices = @transform_1, window_bounds = array<i64: 4, 512>}, {pipeline_mode = #tpu.pipeline_mode<synchronous>, transform_indices = @transform_2, window_bounds = array<i64: 1, 512>}, {pipeline_mode = #tpu.pipeline_mode<synchronous>, transform_indices = @transform_3, window_bounds = array<i64: 512, 256>}, {pipeline_mode = #tpu.pipeline_mode<synchronous>, transform_indices = @transform_4, window_bounds = array<i64: 1, 256>}, {pipeline_mode = #tpu.pipeline_mode<synchronous>, transform_indices = @transform_5, window_bounds = array<i64: 256, 128>}, {pipeline_mode = #tpu.pipeline_mode<synchronous>, transform_indices = @transform_6, window_bounds = array<i64: 1, 128>}, {transform_indices = @transform_7, window_bounds = array<i64: 8, 128>}]} {
    %c0 = arith.constant 0 : index
    %c0_0 = arith.constant 0 : index
    %0 = vector.load %arg1[%c0, %c0_0] : memref<8x4xf32, #tpu.memory_space<vmem>>, vector<8x4xf32>
    %c0_1 = arith.constant 0 : index
    %c0_2 = arith.constant 0 : index
    %1 = vector.load %arg2[%c0_1, %c0_2] : memref<4x512xbf16, #tpu.memory_space<vmem>>, vector<4x512xbf16>
    %2 = arith.extf %1 : vector<4x512xbf16> to vector<4x512xf32>
    %c0_3 = arith.constant 0 : index
    %c0_4 = arith.constant 0 : index
    %3 = vector.load %arg3[%c0_3, %c0_4] : memref<1x512xf32, #tpu.memory_space<vmem>>, vector<1x512xf32>
    %4 = vector.shape_cast %3 : vector<1x512xf32> to vector<1x512xf32>
    %5 = vector.broadcast %4 : vector<1x512xf32> to vector<8x512xf32>
    %6 = vector.extract_strided_slice %0 {offsets = [0, 0], sizes = [8, 1], strides = [1, 1]} : vector<8x4xf32> to vector<8x1xf32>
    %7 = vector.extract_strided_slice %2 {offsets = [0, 0], sizes = [1, 512], strides = [1, 1]} : vector<4x512xf32> to vector<1x512xf32>
    %8 = vector.broadcast %6 : vector<8x1xf32> to vector<8x512xf32>
    %9 = vector.broadcast %7 : vector<1x512xf32> to vector<8x512xf32>
    %10 = arith.mulf %8, %9 : vector<8x512xf32>
    %11 = arith.addf %5, %10 : vector<8x512xf32>
    %12 = vector.extract_strided_slice %0 {offsets = [0, 1], sizes = [8, 1], strides = [1, 1]} : vector<8x4xf32> to vector<8x1xf32>
    %13 = vector.extract_strided_slice %2 {offsets = [1, 0], sizes = [1, 512], strides = [1, 1]} : vector<4x512xf32> to vector<1x512xf32>
    %14 = vector.broadcast %12 : vector<8x1xf32> to vector<8x512xf32>
    %15 = vector.broadcast %13 : vector<1x512xf32> to vector<8x512xf32>
    %16 = arith.mulf %14, %15 : vector<8x512xf32>
    %17 = arith.addf %11, %16 : vector<8x512xf32>
    %18 = vector.extract_strided_slice %0 {offsets = [0, 2], sizes = [8, 1], strides = [1, 1]} : vector<8x4xf32> to vector<8x1xf32>
    %19 = vector.extract_strided_slice %2 {offsets = [2, 0], sizes = [1, 512], strides = [1, 1]} : vector<4x512xf32> to vector<1x512xf32>
    %20 = vector.broadcast %18 : vector<8x1xf32> to vector<8x512xf32>
    %21 = vector.broadcast %19 : vector<1x512xf32> to vector<8x512xf32>
    %22 = arith.mulf %20, %21 : vector<8x512xf32>
    %23 = arith.addf %17, %22 : vector<8x512xf32>
    %24 = vector.extract_strided_slice %0 {offsets = [0, 3], sizes = [8, 1], strides = [1, 1]} : vector<8x4xf32> to vector<8x1xf32>
    %25 = vector.extract_strided_slice %2 {offsets = [3, 0], sizes = [1, 512], strides = [1, 1]} : vector<4x512xf32> to vector<1x512xf32>
    %26 = vector.broadcast %24 : vector<8x1xf32> to vector<8x512xf32>
    %27 = vector.broadcast %25 : vector<1x512xf32> to vector<8x512xf32>
    %28 = arith.mulf %26, %27 : vector<8x512xf32>
    %29 = arith.addf %23, %28 : vector<8x512xf32>
    %cst = arith.constant 0.000000e+00 : f32
    %30 = vector.broadcast %cst : f32 to vector<8x512xf32>
    %31 = arith.maximumf %29, %30 : vector<8x512xf32>
    %32 = arith.truncf %31 : vector<8x512xf32> to vector<8x512xbf16>
    %c0_5 = arith.constant 0 : index
    %c0_6 = arith.constant 0 : index
    %33 = vector.load %arg4[%c0_5, %c0_6] : memref<512x256xbf16, #tpu.memory_space<vmem>>, vector<512x256xbf16>
    %cst_7 = arith.constant dense<0.000000e+00> : vector<8x256xf32>
    %34 = tpu.matmul %32, %33, %cst_7 {dimension_numbers = #tpu.dot_dimension_numbers<[1], [0], [0], [1], [0, 0, 1, 1], [], []>} : vector<8x512xbf16>, vector<512x256xbf16>, vector<8x256xf32> -> vector<8x256xf32>
    %c0_8 = arith.constant 0 : index
    %c0_9 = arith.constant 0 : index
    %35 = vector.load %arg5[%c0_8, %c0_9] : memref<1x256xf32, #tpu.memory_space<vmem>>, vector<1x256xf32>
    %36 = vector.broadcast %35 : vector<1x256xf32> to vector<8x256xf32>
    %37 = arith.addf %34, %36 : vector<8x256xf32>
    %cst_10 = arith.constant 0.000000e+00 : f32
    %38 = vector.broadcast %cst_10 : f32 to vector<8x256xf32>
    %39 = arith.maximumf %37, %38 : vector<8x256xf32>
    %40 = arith.truncf %39 : vector<8x256xf32> to vector<8x256xbf16>
    %c0_11 = arith.constant 0 : index
    %c0_12 = arith.constant 0 : index
    %41 = vector.load %arg6[%c0_11, %c0_12] : memref<256x128xbf16, #tpu.memory_space<vmem>>, vector<256x128xbf16>
    %cst_13 = arith.constant dense<0.000000e+00> : vector<8x128xf32>
    %42 = tpu.matmul %40, %41, %cst_13 {dimension_numbers = #tpu.dot_dimension_numbers<[1], [0], [0], [1], [0, 0, 1, 1], [], []>} : vector<8x256xbf16>, vector<256x128xbf16>, vector<8x128xf32> -> vector<8x128xf32>
    %c0_14 = arith.constant 0 : index
    %c0_15 = arith.constant 0 : index
    %43 = vector.load %arg7[%c0_14, %c0_15] : memref<1x128xf32, #tpu.memory_space<vmem>>, vector<1x128xf32>
    %44 = vector.broadcast %43 : vector<1x128xf32> to vector<8x128xf32>
    %45 = arith.addf %42, %44 : vector<8x128xf32>
    %c0_16 = arith.constant 0 : index
    %c0_17 = arith.constant 0 : index
    %46 = vector.load %arg8[%c0_16, %c0_17] : memref<8x128xf32, #tpu.memory_space<vmem>>, vector<8x128xf32>
    tpu.vector_store %arg8[%c0_16, %c0_17], %45 {strides = array<i32>} : memref<8x128xf32, #tpu.memory_space<vmem>>, vector<8x128xf32>,
    return
  }
  func.func @transform_0(%arg0: i32) -> (i32, i32) {
    %c0_i32 = arith.constant 0 : i32
    %c0_i32_0 = arith.constant 0 : i32
    return %arg0, %c0_i32 : i32, i32
  }
  func.func @transform_1(%arg0: i32) -> (i32, i32) {
    %c0_i32 = arith.constant 0 : i32
    %c0_i32_0 = arith.constant 0 : i32
    %c0_i32_1 = arith.constant 0 : i32
    return %c0_i32, %c0_i32_0 : i32, i32
  }
  func.func @transform_2(%arg0: i32) -> (i32, i32) {
    %c0_i32 = arith.constant 0 : i32
    %c0_i32_0 = arith.constant 0 : i32
    %c0_i32_1 = arith.constant 0 : i32
    return %c0_i32, %c0_i32_0 : i32, i32
  }
  func.func @transform_3(%arg0: i32) -> (i32, i32) {
    %c0_i32 = arith.constant 0 : i32
    %c0_i32_0 = arith.constant 0 : i32
    %c0_i32_1 = arith.constant 0 : i32
    return %c0_i32, %c0_i32_0 : i32, i32
  }
  func.func @transform_4(%arg0: i32) -> (i32, i32) {
    %c0_i32 = arith.constant 0 : i32
    %c0_i32_0 = arith.constant 0 : i32
    %c0_i32_1 = arith.constant 0 : i32
    return %c0_i32, %c0_i32_0 : i32, i32
  }
  func.func @transform_5(%arg0: i32) -> (i32, i32) {
    %c0_i32 = arith.constant 0 : i32
    %c0_i32_0 = arith.constant 0 : i32
    %c0_i32_1 = arith.constant 0 : i32
    return %c0_i32, %c0_i32_0 : i32, i32
  }
  func.func @transform_6(%arg0: i32) -> (i32, i32) {
    %c0_i32 = arith.constant 0 : i32
    %c0_i32_0 = arith.constant 0 : i32
    %c0_i32_1 = arith.constant 0 : i32
    return %c0_i32, %c0_i32_0 : i32, i32
  }
  func.func @transform_7(%arg0: i32) -> (i32, i32) {
    %c0_i32 = arith.constant 0 : i32
    %c0_i32_0 = arith.constant 0 : i32
    return %arg0, %c0_i32 : i32, i32
  }
}

</mosaic_0001>

<llo_original>
// kernel: tpu_custom_call.1
$region0: #{tpu_custom_call.1}
  #allocation0 [shape = 'u32[]', space=smem, size = 0x4, offset = 0x4, fixed_abs, tag = 'smem constant byte address 0x4 - core index']
  #allocation1 [shape = 'u32[144,128]{1,0:T(1,128)}', space=vmem, size = 0x12000, scoped, tag = 'internal scratch']
  %s0 = inlined_call_operand.vmem [shape: f32[8,4], index: 0, kind: input, shape index: {}]
  %s1 = inlined_call_operand.vmem [shape: bf16[4,512], index: 1, kind: input, shape index: {}]
  %s2 = inlined_call_operand.vmem [shape: f32[1,512], index: 2, kind: input, shape index: {}]
  %s3 = inlined_call_operand.hbm [shape: bf16[512,256], index: 3, kind: input, shape index: {}]
  %s4 = inlined_call_operand.vmem [shape: f32[1,256], index: 4, kind: input, shape index: {}]
  %s5 = inlined_call_operand.hbm [shape: bf16[256,128], index: 5, kind: input, shape index: {}]
  %s6 = inlined_call_operand.vmem [shape: f32[1,128], index: 6, kind: input, shape index: {}]
  %s7 = inlined_call_operand.hbm [shape: f32[8,128], index: 7, kind: output, shape index: {}]
  %s8 = sld [smem:[#allocation0]]
  $region46: #{tpu_custom_call.1} parent=0
    _
  %s10 = ssub.s32 1, %s8
  %s11 = scalar_select 0, %s10, %s8
  $region1: #{tpu_custom_call.1} parent=0
    #allocation2 [shape = 'u8[262144]{0}', space=vmem, size = 0x40000, scoped, tag = 'input window, operand 3, single buffered']
    #allocation3 [shape = 's32[1]{0}', space=sflag, size = 0x4, scoped, tag = 'scoped memory for tpu_custom_call.1']
    #allocation4 [shape = 's32[1]{0}', space=sflag, size = 0x4, scoped, tag = 'scoped memory for tpu_custom_call.1']
    #allocation5 [shape = 'u8[65536]{0}', space=vmem, size = 0x10000, scoped, tag = 'input window, operand 5, single buffered']
    #allocation6 [shape = 's32[1]{0}', space=sflag, size = 0x4, scoped, tag = 'scoped memory for tpu_custom_call.1']
    #allocation7 [shape = 'u8[4096]{0}', space=vmem, size = 0x1000, scoped, tag = 'output window, operand 0, single buffered']
    %12 = vsyncpa [#allocation3], 0
    %13 = vsyncpa [#allocation6], 0
    %14 = vsyncpa [#allocation4], 0
    // Predicated region
    $region2: #{tpu_custom_call.1} parent=1 // pred_check
      _
    $region3: #{tpu_custom_call.1} parent=1 // pred_check_branch
      %16 = sbr.rel (0) target = $region5
    $region4: #{tpu_custom_call.1} parent=1 // pred_region
      _
    $region5: #{tpu_custom_call.1} parent=1 // pred_fallthru
      _
    // Predicated region
    $region6: #{tpu_custom_call.1} parent=1 // pred_check
      _
    $region7: #{tpu_custom_call.1} parent=1 // pred_check_branch
      %18 = sbr.rel (0) target = $region9
    $region8: #{tpu_custom_call.1} parent=1 // pred_region
      _
    $region9: #{tpu_custom_call.1} parent=1 // pred_fallthru
      _
    // Predicated region
    $region10: #{tpu_custom_call.1} parent=1 // pred_check
      _
    $region11: #{tpu_custom_call.1} parent=1 // pred_check_branch
      %20 = sbr.rel (0) target = $region13
    $region12: #{tpu_custom_call.1} parent=1 // pred_region
      _
    $region13: #{tpu_custom_call.1} parent=1 // pred_fallthru
      _
    // Predicated region
    $region14: #{tpu_custom_call.1} parent=1 // pred_check
      _
    $region15: #{tpu_custom_call.1} parent=1 // pred_check_branch
      %22 = sbr.rel (0) target = $region17
    $region16: #{tpu_custom_call.1} parent=1 // pred_region
      %s24 = ssub.s32 8192, 8192
      %25 = vsyncadd [#allocation3], %s24
      %s26 = sshll.u32 [#allocation2], 4
      %s27 = int_to_ptr.vmem [resolvable:$true] %s26
      %32 = dma.hbm_to_vmem [thread:$0]  %s3, 8192, %s27, [#allocation3], 128, 128, 8
    $region17: #{tpu_custom_call.1} parent=1 // pred_fallthru
      _
    // Predicated region
    $region18: #{tpu_custom_call.1} parent=1 // pred_check
      _
    $region19: #{tpu_custom_call.1} parent=1 // pred_check_branch
      %34 = sbr.rel (0) target = $region21
    $region20: #{tpu_custom_call.1} parent=1 // pred_region
      _
    $region21: #{tpu_custom_call.1} parent=1 // pred_fallthru
      _
    // Predicated region
    $region22: #{tpu_custom_call.1} parent=1 // pred_check
      _
    $region23: #{tpu_custom_call.1} parent=1 // pred_check_branch
      %36 = sbr.rel (0) target = $region25
    $region24: #{tpu_custom_call.1} parent=1 // pred_region
      %s38 = ssub.s32 2048, 2048
      %39 = vsyncadd [#allocation6], %s38
      %s40 = sshll.u32 [#allocation5], 4
      %s41 = int_to_ptr.vmem [resolvable:$true] %s40
      %46 = dma.hbm_to_vmem [thread:$0]  %s5, 2048, %s41, [#allocation6], 64, 64, 4
    $region25: #{tpu_custom_call.1} parent=1 // pred_fallthru
      _
    // Predicated region
    $region26: #{tpu_custom_call.1} parent=1 // pred_check
      _
    $region27: #{tpu_custom_call.1} parent=1 // pred_check_branch
      %48 = sbr.rel (0) target = $region29
    $region28: #{tpu_custom_call.1} parent=1 // pred_region
      _
    $region29: #{tpu_custom_call.1} parent=1 // pred_fallthru
      _
    // Predicated region
    $region30: #{tpu_custom_call.1} parent=1 // pred_check
      _
    $region31: #{tpu_custom_call.1} parent=1 // pred_check_branch
      %50 = sbr.rel (0) target = $region33
    $region32: #{tpu_custom_call.1} parent=1 // pred_region
      %51 = dma.done [#allocation3], 8192
    $region33: #{tpu_custom_call.1} parent=1 // pred_fallthru
      _
    // Predicated region
    $region34: #{tpu_custom_call.1} parent=1 // pred_check
      _
    $region35: #{tpu_custom_call.1} parent=1 // pred_check_branch
      %53 = sbr.rel (0) target = $region37
    $region36: #{tpu_custom_call.1} parent=1 // pred_region
      %54 = dma.done [#allocation6], 2048
    $region37: #{tpu_custom_call.1} parent=1 // pred_fallthru
      _
    %v56 = vld [vmem:[%s0] sm:$0xff]
    %v57 = vld [vmem:[%s1] sm:$0xff]
    %v58 = vunpack.c.l.bf16 %v57
    %v59 = vunpack.c.h.bf16 %v57
    %v60 = vld [vmem:[%s2] sm:$0xf]
    %v62 = vlaneseq
    %v63 = vshrl.u32 %v62, 7
    %v64 = vsub.s32 0, %v63
    %v65 = vrot.slane %v60, %v64
    %v66 = vlaneseq
    %v67 = vshrl.u32 %v66, 7
    %v68 = vsub.s32 1, %v67
    %v69 = vrot.slane %v60, %v68
    %v70 = vlaneseq
    %v71 = vshrl.u32 %v70, 7
    %v72 = vsub.s32 2, %v71
    %v73 = vrot.slane %v60, %v72
    %v74 = vlaneseq
    %v75 = vshrl.u32 %v74, 7
    %v76 = vsub.s32 3, %v75
    %v77 = vrot.slane %v60, %v76
    %83 = vset.pattern.permute.xlu0 0
    %84 = vperm.xlu0 %83, %v56
    %v85 = vpop.permute.xlu0 %84
    %v89 = vlaneseq
    %v90 = vshrl.u32 %v89, 7
    %v91 = vsub.s32 0, %v90
    %v92 = vrot.slane %v58, %v91
    %v93 = vlaneseq
    %v94 = vshrl.u32 %v93, 7
    %v95 = vsub.s32 4, %v94
    %v96 = vrot.slane %v58, %v95
    %v97 = vlaneseq
    %v98 = vshrl.u32 %v97, 7
    %v99 = vsub.s32 0, %v98
    %v100 = vrot.slane %v59, %v99
    %v101 = vlaneseq
    %v102 = vshrl.u32 %v101, 7
    %v103 = vsub.s32 4, %v102
    %v104 = vrot.slane %v59, %v103
    %v109 = vlaneseq
    %v110 = vshrl.u32 %v109, 7
    %v111 = vsub.s32 0, %v110
    %v112 = vrot.slane %v92, %v111
    %v113 = vlaneseq
    %v114 = vshrl.u32 %v113, 7
    %v115 = vsub.s32 0, %v114
    %v116 = vrot.slane %v96, %v115
    %v117 = vlaneseq
    %v118 = vshrl.u32 %v117, 7
    %v119 = vsub.s32 0, %v118
    %v120 = vrot.slane %v100, %v119
    %v121 = vlaneseq
    %v122 = vshrl.u32 %v121, 7
    %v123 = vsub.s32 0, %v122
    %v124 = vrot.slane %v104, %v123
    %v125 = vmul.f32 %v85, %v112
    %v126 = vmul.f32 %v85, %v116
    %v127 = vmul.f32 %v85, %v120
    %v128 = vmul.f32 %v85, %v124
    %v129 = vadd.f32 %v65, %v125
    %v130 = vadd.f32 %v69, %v126
    %v131 = vadd.f32 %v73, %v127
    %v132 = vadd.f32 %v77, %v128
    %133 = vset.pattern.permute.xlu0 1
    %134 = vperm.xlu0 %133, %v56
    %v135 = vpop.permute.xlu0 %134
    %v137 = vlaneseq
    %v138 = vshrl.u32 %v137, 7
    %v139 = vsub.s32 1, %v138
    %v140 = vrot.slane %v58, %v139
    %v141 = vlaneseq
    %v142 = vshrl.u32 %v141, 7
    %v143 = vsub.s32 5, %v142
    %v144 = vrot.slane %v58, %v143
    %v145 = vlaneseq
    %v146 = vshrl.u32 %v145, 7
    %v147 = vsub.s32 1, %v146
    %v148 = vrot.slane %v59, %v147
    %v149 = vlaneseq
    %v150 = vshrl.u32 %v149, 7
    %v151 = vsub.s32 5, %v150
    %v152 = vrot.slane %v59, %v151
    %v157 = vlaneseq
    %v158 = vshrl.u32 %v157, 7
    %v159 = vsub.s32 1, %v158
    %v160 = vrot.slane %v140, %v159
    %v161 = vlaneseq
    %v162 = vshrl.u32 %v161, 7
    %v163 = vsub.s32 1, %v162
    %v164 = vrot.slane %v144, %v163
    %v165 = vlaneseq
    %v166 = vshrl.u32 %v165, 7
    %v167 = vsub.s32 1, %v166
    %v168 = vrot.slane %v148, %v167
    %v169 = vlaneseq
    %v170 = vshrl.u32 %v169, 7
    %v171 = vsub.s32 1, %v170
    %v172 = vrot.slane %v152, %v171
    %v173 = vmul.f32 %v135, %v160
    %v174 = vmul.f32 %v135, %v164
    %v175 = vmul.f32 %v135, %v168
    %v176 = vmul.f32 %v135, %v172
    %v177 = vadd.f32 %v129, %v173
    %v178 = vadd.f32 %v130, %v174
    %v179 = vadd.f32 %v131, %v175
    %v180 = vadd.f32 %v132, %v176
    %181 = vset.pattern.permute.xlu0 2
    %182 = vperm.xlu0 %181, %v56
    %v183 = vpop.permute.xlu0 %182
    %v185 = vlaneseq
    %v186 = vshrl.u32 %v185, 7
    %v187 = vsub.s32 2, %v186
    %v188 = vrot.slane %v58, %v187
    %v189 = vlaneseq
    %v190 = vshrl.u32 %v189, 7
    %v191 = vsub.s32 6, %v190
    %v192 = vrot.slane %v58, %v191
    %v193 = vlaneseq
    %v194 = vshrl.u32 %v193, 7
    %v195 = vsub.s32 2, %v194
    %v196 = vrot.slane %v59, %v195
    %v197 = vlaneseq
    %v198 = vshrl.u32 %v197, 7
    %v199 = vsub.s32 6, %v198
    %v200 = vrot.slane %v59, %v199
    %v205 = vlaneseq
    %v206 = vshrl.u32 %v205, 7
    %v207 = vsub.s32 2, %v206
    %v208 = vrot.slane %v188, %v207
    %v209 = vlaneseq
    %v210 = vshrl.u32 %v209, 7
    %v211 = vsub.s32 2, %v210
    %v212 = vrot.slane %v192, %v211
    %v213 = vlaneseq
    %v214 = vshrl.u32 %v213, 7
    %v215 = vsub.s32 2, %v214
    %v216 = vrot.slane %v196, %v215
    %v217 = vlaneseq
    %v218 = vshrl.u32 %v217, 7
    %v219 = vsub.s32 2, %v218
    %v220 = vrot.slane %v200, %v219
    %v221 = vmul.f32 %v183, %v208
    %v222 = vmul.f32 %v183, %v212
    %v223 = vmul.f32 %v183, %v216
    %v224 = vmul.f32 %v183, %v220
    %v225 = vadd.f32 %v177, %v221
    %v226 = vadd.f32 %v178, %v222
    %v227 = vadd.f32 %v179, %v223
    %v228 = vadd.f32 %v180, %v224
    %229 = vset.pattern.permute.xlu0 3
    %230 = vperm.xlu0 %229, %v56
    %v231 = vpop.permute.xlu0 %230
    %v233 = vlaneseq
    %v234 = vshrl.u32 %v233, 7
    %v235 = vsub.s32 3, %v234
    %v236 = vrot.slane %v58, %v235
    %v237 = vlaneseq
    %v238 = vshrl.u32 %v237, 7
    %v239 = vsub.s32 7, %v238
    %v240 = vrot.slane %v58, %v239
    %v241 = vlaneseq
    %v242 = vshrl.u32 %v241, 7
    %v243 = vsub.s32 3, %v242
    %v244 = vrot.slane %v59, %v243
    %v245 = vlaneseq
    %v246 = vshrl.u32 %v245, 7
    %v247 = vsub.s32 7, %v246
    %v248 = vrot.slane %v59, %v247
    %v253 = vlaneseq
    %v254 = vshrl.u32 %v253, 7
    %v255 = vsub.s32 3, %v254
    %v256 = vrot.slane %v236, %v255
    %v257 = vlaneseq
    %v258 = vshrl.u32 %v257, 7
    %v259 = vsub.s32 3, %v258
    %v260 = vrot.slane %v240, %v259
    %v261 = vlaneseq
    %v262 = vshrl.u32 %v261, 7
    %v263 = vsub.s32 3, %v262
    %v264 = vrot.slane %v244, %v263
    %v265 = vlaneseq
    %v266 = vshrl.u32 %v265, 7
    %v267 = vsub.s32 3, %v266
    %v268 = vrot.slane %v248, %v267
    %v269 = vmul.f32 %v231, %v256
    %v270 = vmul.f32 %v231, %v260
    %v271 = vmul.f32 %v231, %v264
    %v272 = vmul.f32 %v231, %v268
    %v273 = vadd.f32 %v225, %v269
    %v274 = vadd.f32 %v226, %v270
    %v275 = vadd.f32 %v227, %v271
    %v276 = vadd.f32 %v228, %v272
    %v277 = vmax.f32 %v273, 0.0
    %v278 = vmax.f32 %v274, 0.0
    %v279 = vmax.f32 %v275, 0.0
    %v280 = vmax.f32 %v276, 0.0
    %v281 = vpack.c.bf16 %v277, %v277
    %v282 = vpack.c.bf16 %v278, %v278
    %v283 = vpack.c.bf16 %v279, %v279
    %v284 = vpack.c.bf16 %v280, %v280
    %v285 = vld [vmem:[#allocation2] sm:$0xff]
    %v286 = vld [vmem:[#allocation2 + $0x8] sm:$0xff]
    %v287 = vld [vmem:[#allocation2 + $0x10] sm:$0xff]
    %v288 = vld [vmem:[#allocation2 + $0x18] sm:$0xff]
    %v289 = vld [vmem:[#allocation2 + $0x20] sm:$0xff]
    %v290 = vld [vmem:[#allocation2 + $0x28] sm:$0xff]
    %v291 = vld [vmem:[#allocation2 + $0x30] sm:$0xff]
    %v292 = vld [vmem:[#allocation2 + $0x38] sm:$0xff]
    %v293 = vld [vmem:[#allocation2 + $0x40] sm:$0xff]
    %v294 = vld [vmem:[#allocation2 + $0x48] sm:$0xff]
    %v295 = vld [vmem:[#allocation2 + $0x50] sm:$0xff]
    %v296 = vld [vmem:[#allocation2 + $0x58] sm:$0xff]
    %v297 = vld [vmem:[#allocation2 + $0x60] sm:$0xff]
    %v298 = vld [vmem:[#allocation2 + $0x68] sm:$0xff]
    %v299 = vld [vmem:[#allocation2 + $0x70] sm:$0xff]
    %v300 = vld [vmem:[#allocation2 + $0x78] sm:$0xff]
    %v301 = vld [vmem:[#allocation2 + $0x80] sm:$0xff]
    %v302 = vld [vmem:[#allocation2 + $0x88] sm:$0xff]
    %v303 = vld [vmem:[#allocation2 + $0x90] sm:$0xff]
    %v304 = vld [vmem:[#allocation2 + $0x98] sm:$0xff]
    %v305 = vld [vmem:[#allocation2 + $0xa0] sm:$0xff]
    %v306 = vld [vmem:[#allocation2 + $0xa8] sm:$0xff]
    %v307 = vld [vmem:[#allocation2 + $0xb0] sm:$0xff]
    %v308 = vld [vmem:[#allocation2 + $0xb8] sm:$0xff]
    %v309 = vld [vmem:[#allocation2 + $0xc0] sm:$0xff]
    %v310 = vld [vmem:[#allocation2 + $0xc8] sm:$0xff]
    %v311 = vld [vmem:[#allocation2 + $0xd0] sm:$0xff]
    %v312 = vld [vmem:[#allocation2 + $0xd8] sm:$0xff]
    %v313 = vld [vmem:[#allocation2 + $0xe0] sm:$0xff]
    %v314 = vld [vmem:[#allocation2 + $0xe8] sm:$0xff]
    %v315 = vld [vmem:[#allocation2 + $0xf0] sm:$0xff]
    %v316 = vld [vmem:[#allocation2 + $0xf8] sm:$0xff]
    %v317 = vld [vmem:[#allocation2 + $0x100] sm:$0xff]
    %v318 = vld [vmem:[#allocation2 + $0x108] sm:$0xff]
    %v319 = vld [vmem:[#allocation2 + $0x110] sm:$0xff]
    %v320 = vld [vmem:[#allocation2 + $0x118] sm:$0xff]
    %v321 = vld [vmem:[#allocation2 + $0x120] sm:$0xff]
    %v322 = vld [vmem:[#allocation2 + $0x128] sm:$0xff]
    %v323 = vld [vmem:[#allocation2 + $0x130] sm:$0xff]
    %v324 = vld [vmem:[#allocation2 + $0x138] sm:$0xff]
    %v325 = vld [vmem:[#allocation2 + $0x140] sm:$0xff]
    %v326 = vld [vmem:[#allocation2 + $0x148] sm:$0xff]
    %v327 = vld [vmem:[#allocation2 + $0x150] sm:$0xff]
    %v328 = vld [vmem:[#allocation2 + $0x158] sm:$0xff]
    %v329 = vld [vmem:[#allocation2 + $0x160] sm:$0xff]
    %v330 = vld [vmem:[#allocation2 + $0x168] sm:$0xff]
    %v331 = vld [vmem:[#allocation2 + $0x170] sm:$0xff]
    %v332 = vld [vmem:[#allocation2 + $0x178] sm:$0xff]
    %v333 = vld [vmem:[#allocation2 + $0x180] sm:$0xff]
    %v334 = vld [vmem:[#allocation2 + $0x188] sm:$0xff]
    %v335 = vld [vmem:[#allocation2 + $0x190] sm:$0xff]
    %v336 = vld [vmem:[#allocation2 + $0x198] sm:$0xff]
    %v337 = vld [vmem:[#allocation2 + $0x1a0] sm:$0xff]
    %v338 = vld [vmem:[#allocation2 + $0x1a8] sm:$0xff]
    %v339 = vld [vmem:[#allocation2 + $0x1b0] sm:$0xff]
    %v340 = vld [vmem:[#allocation2 + $0x1b8] sm:$0xff]
    %v341 = vld [vmem:[#allocation2 + $0x1c0] sm:$0xff]
    %v342 = vld [vmem:[#allocation2 + $0x1c8] sm:$0xff]
    %v343 = vld [vmem:[#allocation2 + $0x1d0] sm:$0xff]
    %v344 = vld [vmem:[#allocation2 + $0x1d8] sm:$0xff]
    %v345 = vld [vmem:[#allocation2 + $0x1e0] sm:$0xff]
    %v346 = vld [vmem:[#allocation2 + $0x1e8] sm:$0xff]
    %v347 = vld [vmem:[#allocation2 + $0x1f0] sm:$0xff]
    %v348 = vld [vmem:[#allocation2 + $0x1f8] sm:$0xff]
    %v349 = vld [vmem:[%s4] sm:$0x3]
    %v351 = vlaneseq
    %v352 = vshrl.u32 %v351, 7
    %v353 = vsub.s32 0, %v352
    %v354 = vrot.slane %v349, %v353
    %v355 = vlaneseq
    %v356 = vshrl.u32 %v355, 7
    %v357 = vsub.s32 1, %v356
    %v358 = vrot.slane %v349, %v357
    %v425 = vunpack.c.l.b16 %v285
    %v426 = vunpack.c.h.b16 %v285
    %v427 = vunpack.c.l.b16 %v286
    %v428 = vunpack.c.h.b16 %v286
    %v429 = vunpack.c.l.b16 %v287
    %v430 = vunpack.c.h.b16 %v287
    %v431 = vunpack.c.l.b16 %v288
    %v432 = vunpack.c.h.b16 %v288
    %v433 = vunpack.c.l.b16 %v289
    %v434 = vunpack.c.h.b16 %v289
    %v435 = vunpack.c.l.b16 %v290
    %v436 = vunpack.c.h.b16 %v290
    %v437 = vunpack.c.l.b16 %v291
    %v438 = vunpack.c.h.b16 %v291
    %v439 = vunpack.c.l.b16 %v292
    %v440 = vunpack.c.h.b16 %v292
    %v441 = vunpack.c.l.b16 %v293
    %v442 = vunpack.c.h.b16 %v293
    %v443 = vunpack.c.l.b16 %v294
    %v444 = vunpack.c.h.b16 %v294
    %v445 = vunpack.c.l.b16 %v295
    %v446 = vunpack.c.h.b16 %v295
    %v447 = vunpack.c.l.b16 %v296
    %v448 = vunpack.c.h.b16 %v296
    %v449 = vunpack.c.l.b16 %v297
    %v450 = vunpack.c.h.b16 %v297
    %v451 = vunpack.c.l.b16 %v298
    %v452 = vunpack.c.h.b16 %v298
    %v453 = vunpack.c.l.b16 %v299
    %v454 = vunpack.c.h.b16 %v299
    %v455 = vunpack.c.l.b16 %v300
    %v456 = vunpack.c.h.b16 %v300
    %v457 = vunpack.c.l.b16 %v301
    %v458 = vunpack.c.h.b16 %v301
    %v459 = vunpack.c.l.b16 %v302
    %v460 = vunpack.c.h.b16 %v302
    %v461 = vunpack.c.l.b16 %v303
    %v462 = vunpack.c.h.b16 %v303
    %v463 = vunpack.c.l.b16 %v304
    %v464 = vunpack.c.h.b16 %v304
    %v465 = vunpack.c.l.b16 %v305
    %v466 = vunpack.c.h.b16 %v305
    %v467 = vunpack.c.l.b16 %v306
    %v468 = vunpack.c.h.b16 %v306
    %v469 = vunpack.c.l.b16 %v307
    %v470 = vunpack.c.h.b16 %v307
    %v471 = vunpack.c.l.b16 %v308
    %v472 = vunpack.c.h.b16 %v308
    %v473 = vunpack.c.l.b16 %v309
    %v474 = vunpack.c.h.b16 %v309
    %v475 = vunpack.c.l.b16 %v310
    %v476 = vunpack.c.h.b16 %v310
    %v477 = vunpack.c.l.b16 %v311
    %v478 = vunpack.c.h.b16 %v311
    %v479 = vunpack.c.l.b16 %v312
    %v480 = vunpack.c.h.b16 %v312
    %v481 = vunpack.c.l.b16 %v313
    %v482 = vunpack.c.h.b16 %v313
    %v483 = vunpack.c.l.b16 %v314
    %v484 = vunpack.c.h.b16 %v314
    %v485 = vunpack.c.l.b16 %v315
    %v486 = vunpack.c.h.b16 %v315
    %v487 = vunpack.c.l.b16 %v316
    %v488 = vunpack.c.h.b16 %v316
    %v489 = vunpack.c.l.b16 %v317
    %v490 = vunpack.c.h.b16 %v317
    %v491 = vunpack.c.l.b16 %v318
    %v492 = vunpack.c.h.b16 %v318
    %v493 = vunpack.c.l.b16 %v319
    %v494 = vunpack.c.h.b16 %v319
    %v495 = vunpack.c.l.b16 %v320
    %v496 = vunpack.c.h.b16 %v320
    %v497 = vunpack.c.l.b16 %v321
    %v498 = vunpack.c.h.b16 %v321
    %v499 = vunpack.c.l.b16 %v322
    %v500 = vunpack.c.h.b16 %v322
    %v501 = vunpack.c.l.b16 %v323
    %v502 = vunpack.c.h.b16 %v323
    %v503 = vunpack.c.l.b16 %v324
    %v504 = vunpack.c.h.b16 %v324
    %v505 = vunpack.c.l.b16 %v325
    %v506 = vunpack.c.h.b16 %v325
    %v507 = vunpack.c.l.b16 %v326
    %v508 = vunpack.c.h.b16 %v326
    %v509 = vunpack.c.l.b16 %v327
    %v510 = vunpack.c.h.b16 %v327
    %v511 = vunpack.c.l.b16 %v328
    %v512 = vunpack.c.h.b16 %v328
    %v513 = vunpack.c.l.b16 %v329
    %v514 = vunpack.c.h.b16 %v329
    %v515 = vunpack.c.l.b16 %v330
    %v516 = vunpack.c.h.b16 %v330
    %v517 = vunpack.c.l.b16 %v331
    %v518 = vunpack.c.h.b16 %v331
    %v519 = vunpack.c.l.b16 %v332
    %v520 = vunpack.c.h.b16 %v332
    %v521 = vunpack.c.l.b16 %v333
    %v522 = vunpack.c.h.b16 %v333
    %v523 = vunpack.c.l.b16 %v334
    %v524 = vunpack.c.h.b16 %v334
    %v525 = vunpack.c.l.b16 %v335
    %v526 = vunpack.c.h.b16 %v335
    %v527 = vunpack.c.l.b16 %v336
    %v528 = vunpack.c.h.b16 %v336
    %v529 = vunpack.c.l.b16 %v337
    %v530 = vunpack.c.h.b16 %v337
    %v531 = vunpack.c.l.b16 %v338
    %v532 = vunpack.c.h.b16 %v338
    %v533 = vunpack.c.l.b16 %v339
    %v534 = vunpack.c.h.b16 %v339
    %v535 = vunpack.c.l.b16 %v340
    %v536 = vunpack.c.h.b16 %v340
    %v537 = vunpack.c.l.b16 %v341
    %v538 = vunpack.c.h.b16 %v341
    %v539 = vunpack.c.l.b16 %v342
    %v540 = vunpack.c.h.b16 %v342
    %v541 = vunpack.c.l.b16 %v343
    %v542 = vunpack.c.h.b16 %v343
    %v543 = vunpack.c.l.b16 %v344
    %v544 = vunpack.c.h.b16 %v344
    %v545 = vunpack.c.l.b16 %v345
    %v546 = vunpack.c.h.b16 %v345
    %v547 = vunpack.c.l.b16 %v346
    %v548 = vunpack.c.h.b16 %v346
    %v549 = vunpack.c.l.b16 %v347
    %v550 = vunpack.c.h.b16 %v347
    %v551 = vunpack.c.l.b16 %v348
    %v552 = vunpack.c.h.b16 %v348
    %v553 = vpack.c.b16 %v427, %v425
    %v554 = vpack.c.b16 %v428, %v426
    %v555 = vpack.c.b16 %v431, %v429
    %v556 = vpack.c.b16 %v432, %v430
    %v557 = vpack.c.b16 %v435, %v433
    %v558 = vpack.c.b16 %v436, %v434
    %v559 = vpack.c.b16 %v439, %v437
    %v560 = vpack.c.b16 %v440, %v438
    %v561 = vpack.c.b16 %v443, %v441
    %v562 = vpack.c.b16 %v444, %v442
    %v563 = vpack.c.b16 %v447, %v445
    %v564 = vpack.c.b16 %v448, %v446
    %v565 = vpack.c.b16 %v451, %v449
    %v566 = vpack.c.b16 %v452, %v450
    %v567 = vpack.c.b16 %v455, %v453
    %v568 = vpack.c.b16 %v456, %v454
    %v569 = vpack.c.b16 %v459, %v457
    %v570 = vpack.c.b16 %v460, %v458
    %v571 = vpack.c.b16 %v463, %v461
    %v572 = vpack.c.b16 %v464, %v462
    %v573 = vpack.c.b16 %v467, %v465
    %v574 = vpack.c.b16 %v468, %v466
    %v575 = vpack.c.b16 %v471, %v469
    %v576 = vpack.c.b16 %v472, %v470
    %v577 = vpack.c.b16 %v475, %v473
    %v578 = vpack.c.b16 %v476, %v474
    %v579 = vpack.c.b16 %v479, %v477
    %v580 = vpack.c.b16 %v480, %v478
    %v581 = vpack.c.b16 %v483, %v481
    %v582 = vpack.c.b16 %v484, %v482
    %v583 = vpack.c.b16 %v487, %v485
    %v584 = vpack.c.b16 %v488, %v486
    %v585 = vpack.c.b16 %v491, %v489
    %v586 = vpack.c.b16 %v492, %v490
    %v587 = vpack.c.b16 %v495, %v493
    %v588 = vpack.c.b16 %v496, %v494
    %v589 = vpack.c.b16 %v499, %v497
    %v590 = vpack.c.b16 %v500, %v498
    %v591 = vpack.c.b16 %v503, %v501
    %v592 = vpack.c.b16 %v504, %v502
    %v593 = vpack.c.b16 %v507, %v505
    %v594 = vpack.c.b16 %v508, %v506
    %v595 = vpack.c.b16 %v511, %v509
    %v596 = vpack.c.b16 %v512, %v510
    %v597 = vpack.c.b16 %v515, %v513
    %v598 = vpack.c.b16 %v516, %v514
    %v599 = vpack.c.b16 %v519, %v517
    %v600 = vpack.c.b16 %v520, %v518
    %v601 = vpack.c.b16 %v523, %v521
    %v602 = vpack.c.b16 %v524, %v522
    %v603 = vpack.c.b16 %v527, %v525
    %v604 = vpack.c.b16 %v528, %v526
    %v605 = vpack.c.b16 %v531, %v529
    %v606 = vpack.c.b16 %v532, %v530
    %v607 = vpack.c.b16 %v535, %v533
    %v608 = vpack.c.b16 %v536, %v534
    %v609 = vpack.c.b16 %v539, %v537
    %v610 = vpack.c.b16 %v540, %v538
    %v611 = vpack.c.b16 %v543, %v541
    %v612 = vpack.c.b16 %v544, %v542
    %v613 = vpack.c.b16 %v547, %v545
    %v614 = vpack.c.b16 %v548, %v546
    %v615 = vpack.c.b16 %v551, %v549
    %v616 = vpack.c.b16 %v552, %v550
    %681 = vmatprep.subr.bf16.mxu0 %v554
    %682 = vmatpush1.bf16.msra.mxu0 %v553
    %683 = vmatprep.subr.bf16.mxu0 %v556
    %684 = vmatpush1.bf16.msra.mxu0 %v555
    %685 = vmatprep.subr.bf16.mxu0 %v558
    %686 = vmatpush1.bf16.msra.mxu0 %v557
    %687 = vmatprep.subr.bf16.mxu0 %v560
    %688 = vmatpush1.bf16.msra.mxu0 %v559
    %689 = vmatprep.subr.bf16.mxu0 %v562
    %690 = vmatpush1.bf16.msra.mxu0 %v561
    %691 = vmatprep.subr.bf16.mxu0 %v564
    %692 = vmatpush1.bf16.msra.mxu0 %v563
    %693 = vmatprep.subr.bf16.mxu0 %v566
    %694 = vmatpush1.bf16.msra.mxu0 %v565
    %695 = vmatprep.subr.bf16.mxu0 %v568
    %696 = vmatpush1.bf16.msra.mxu0 %v567
    %697 = vmatprep.subr.bf16.mxu0 %v570
    %698 = vmatpush1.bf16.msra.mxu0 %v569
    %699 = vmatprep.subr.bf16.mxu0 %v572
    %700 = vmatpush1.bf16.msra.mxu0 %v571
    %701 = vmatprep.subr.bf16.mxu0 %v574
    %702 = vmatpush1.bf16.msra.mxu0 %v573
    %703 = vmatprep.subr.bf16.mxu0 %v576
    %704 = vmatpush1.bf16.msra.mxu0 %v575
    %705 = vmatprep.subr.bf16.mxu0 %v578
    %706 = vmatpush1.bf16.msra.mxu0 %v577
    %707 = vmatprep.subr.bf16.mxu0 %v580
    %708 = vmatpush1.bf16.msra.mxu0 %v579
    %709 = vmatprep.subr.bf16.mxu0 %v582
    %710 = vmatpush1.bf16.msra.mxu0 %v581
    %711 = vmatprep.subr.bf16.mxu0 %v584
    %712 = vmatpush1.bf16.msra.mxu0 %v583
    %713 = vmatprep.mubr.bf16.mxu0 %v282
    %714 = vmatmul.mubr.bf16.gmra.mrb[0].mxu0 %v281
    %v715 = vpop.f32.mrb[0].mxu0
    %v716 = vadd.f32 %v354, %v715
    %v717 = vpop.f32.mrb[0].mxu0
    %v718 = vadd.f32 %v358, %v717
    %v719 = vpop.f32.mrb[0].mxu0
    %v720 = vpop.f32.mrb[0].mxu0
    %721 = vdwg.mxu0
    %722 = vmatprep.subr.bf16.mxu0 %v586
    %723 = vmatpush1.bf16.msra.mxu0 %v585
    %724 = vmatprep.subr.bf16.mxu0 %v588
    %725 = vmatpush1.bf16.msra.mxu0 %v587
    %726 = vmatprep.subr.bf16.mxu0 %v590
    %727 = vmatpush1.bf16.msra.mxu0 %v589
    %728 = vmatprep.subr.bf16.mxu0 %v592
    %729 = vmatpush1.bf16.msra.mxu0 %v591
    %730 = vmatprep.subr.bf16.mxu0 %v594
    %731 = vmatpush1.bf16.msra.mxu0 %v593
    %732 = vmatprep.subr.bf16.mxu0 %v596
    %733 = vmatpush1.bf16.msra.mxu0 %v595
    %734 = vmatprep.subr.bf16.mxu0 %v598
    %735 = vmatpush1.bf16.msra.mxu0 %v597
    %736 = vmatprep.subr.bf16.mxu0 %v600
    %737 = vmatpush1.bf16.msra.mxu0 %v599
    %738 = vmatprep.subr.bf16.mxu0 %v602
    %739 = vmatpush1.bf16.msra.mxu0 %v601
    %740 = vmatprep.subr.bf16.mxu0 %v604
    %741 = vmatpush1.bf16.msra.mxu0 %v603
    %742 = vmatprep.subr.bf16.mxu0 %v606
    %743 = vmatpush1.bf16.msra.mxu0 %v605
    %744 = vmatprep.subr.bf16.mxu0 %v608
    %745 = vmatpush1.bf16.msra.mxu0 %v607
    %746 = vmatprep.subr.bf16.mxu0 %v610
    %747 = vmatpush1.bf16.msra.mxu0 %v609
    %748 = vmatprep.subr.bf16.mxu0 %v612
    %749 = vmatpush1.bf16.msra.mxu0 %v611
    %750 = vmatprep.subr.bf16.mxu0 %v614
    %751 = vmatpush1.bf16.msra.mxu0 %v613
    %752 = vmatprep.subr.bf16.mxu0 %v616
    %753 = vmatpush1.bf16.msra.mxu0 %v615
    %754 = vmatprep.mubr.bf16.mxu0 %v284
    %755 = vmatmul.mubr.bf16.gmra.mrb[0].mxu0 %v283
    %v756 = vpop.f32.mrb[0].mxu0
    %v757 = vadd.f32 %v716, %v756
    %v758 = vpop.f32.mrb[0].mxu0
    %v759 = vadd.f32 %v718, %v758
    %v760 = vpop.f32.mrb[0].mxu0
    %v761 = vpop.f32.mrb[0].mxu0
    %762 = vdwg.mxu0
    %v763 = vmax.f32 %v757, 0.0
    %v764 = vmax.f32 %v759, 0.0
    %v765 = vpack.c.bf16 %v763, %v763
    %v766 = vpack.c.bf16 %v764, %v764
    %v767 = vld [vmem:[#allocation5] sm:$0xf]
    %v768 = vld [vmem:[#allocation5 + $0x4] sm:$0xf]
    %v769 = vld [vmem:[#allocation5 + $0x8] sm:$0xf]
    %v770 = vld [vmem:[#allocation5 + $0xc] sm:$0xf]
    %v771 = vld [vmem:[#allocation5 + $0x10] sm:$0xf]
    %v772 = vld [vmem:[#allocation5 + $0x14] sm:$0xf]
    %v773 = vld [vmem:[#allocation5 + $0x18] sm:$0xf]
    %v774 = vld [vmem:[#allocation5 + $0x1c] sm:$0xf]
    %v775 = vld [vmem:[#allocation5 + $0x20] sm:$0xf]
    %v776 = vld [vmem:[#allocation5 + $0x24] sm:$0xf]
    %v777 = vld [vmem:[#allocation5 + $0x28] sm:$0xf]
    %v778 = vld [vmem:[#allocation5 + $0x2c] sm:$0xf]
    %v779 = vld [vmem:[#allocation5 + $0x30] sm:$0xf]
    %v780 = vld [vmem:[#allocation5 + $0x34] sm:$0xf]
    %v781 = vld [vmem:[#allocation5 + $0x38] sm:$0xf]
    %v782 = vld [vmem:[#allocation5 + $0x3c] sm:$0xf]
    %v783 = vld [vmem:[#allocation5 + $0x40] sm:$0xf]
    %v784 = vld [vmem:[#allocation5 + $0x44] sm:$0xf]
    %v785 = vld [vmem:[#allocation5 + $0x48] sm:$0xf]
    %v786 = vld [vmem:[#allocation5 + $0x4c] sm:$0xf]
    %v787 = vld [vmem:[#allocation5 + $0x50] sm:$0xf]
    %v788 = vld [vmem:[#allocation5 + $0x54] sm:$0xf]
    %v789 = vld [vmem:[#allocation5 + $0x58] sm:$0xf]
    %v790 = vld [vmem:[#allocation5 + $0x5c] sm:$0xf]
    %v791 = vld [vmem:[#allocation5 + $0x60] sm:$0xf]
    %v792 = vld [vmem:[#allocation5 + $0x64] sm:$0xf]
    %v793 = vld [vmem:[#allocation5 + $0x68] sm:$0xf]
    %v794 = vld [vmem:[#allocation5 + $0x6c] sm:$0xf]
    %v795 = vld [vmem:[#allocation5 + $0x70] sm:$0xf]
    %v796 = vld [vmem:[#allocation5 + $0x74] sm:$0xf]
    %v797 = vld [vmem:[#allocation5 + $0x78] sm:$0xf]
    %v798 = vld [vmem:[#allocation5 + $0x7c] sm:$0xf]
    %v799 = vld [vmem:[%s6] sm:$0x1]
    %v801 = vlaneseq
    %v802 = vshrl.u32 %v801, 7
    %v803 = vsub.s32 0, %v802
    %v804 = vrot.slane %v799, %v803
    %v838 = vunpack.c.l.b16 %v767
    %v839 = vunpack.c.l.b16 %v768
    %v840 = vunpack.c.l.b16 %v769
    %v841 = vunpack.c.l.b16 %v770
    %v842 = vunpack.c.l.b16 %v771
    %v843 = vunpack.c.l.b16 %v772
    %v844 = vunpack.c.l.b16 %v773
    %v845 = vunpack.c.l.b16 %v774
    %v846 = vunpack.c.l.b16 %v775
    %v847 = vunpack.c.l.b16 %v776
    %v848 = vunpack.c.l.b16 %v777
    %v849 = vunpack.c.l.b16 %v778
    %v850 = vunpack.c.l.b16 %v779
    %v851 = vunpack.c.l.b16 %v780
    %v852 = vunpack.c.l.b16 %v781
    %v853 = vunpack.c.l.b16 %v782
    %v854 = vunpack.c.l.b16 %v783
    %v855 = vunpack.c.l.b16 %v784
    %v856 = vunpack.c.l.b16 %v785
    %v857 = vunpack.c.l.b16 %v786
    %v858 = vunpack.c.l.b16 %v787
    %v859 = vunpack.c.l.b16 %v788
    %v860 = vunpack.c.l.b16 %v789
    %v861 = vunpack.c.l.b16 %v790
    %v862 = vunpack.c.l.b16 %v791
    %v863 = vunpack.c.l.b16 %v792
    %v864 = vunpack.c.l.b16 %v793
    %v865 = vunpack.c.l.b16 %v794
    %v866 = vunpack.c.l.b16 %v795
    %v867 = vunpack.c.l.b16 %v796
    %v868 = vunpack.c.l.b16 %v797
    %v869 = vunpack.c.l.b16 %v798
    %v870 = vpack.c.b16 %v839, %v838
    %v871 = vpack.c.b16 %v841, %v840
    %v872 = vpack.c.b16 %v843, %v842
    %v873 = vpack.c.b16 %v845, %v844
    %v874 = vpack.c.b16 %v847, %v846
    %v875 = vpack.c.b16 %v849, %v848
    %v876 = vpack.c.b16 %v851, %v850
    %v877 = vpack.c.b16 %v853, %v852
    %v878 = vpack.c.b16 %v855, %v854
    %v879 = vpack.c.b16 %v857, %v856
    %v880 = vpack.c.b16 %v859, %v858
    %v881 = vpack.c.b16 %v861, %v860
    %v882 = vpack.c.b16 %v863, %v862
    %v883 = vpack.c.b16 %v865, %v864
    %v884 = vpack.c.b16 %v867, %v866
    %v885 = vpack.c.b16 %v869, %v868
    %902 = vmatprep.subr.bf16.mxu0 0
    %903 = vmatpush1.bf16.msra.mxu0 %v870
    %904 = vmatprep.subr.bf16.mxu0 0
    %905 = vmatpush1.bf16.msra.mxu0 %v871
    %906 = vmatprep.subr.bf16.mxu0 0
    %907 = vmatpush1.bf16.msra.mxu0 %v872
    %908 = vmatprep.subr.bf16.mxu0 0
    %909 = vmatpush1.bf16.msra.mxu0 %v873
    %910 = vmatprep.subr.bf16.mxu0 0
    %911 = vmatpush1.bf16.msra.mxu0 %v874
    %912 = vmatprep.subr.bf16.mxu0 0
    %913 = vmatpush1.bf16.msra.mxu0 %v875
    %914 = vmatprep.subr.bf16.mxu0 0
    %915 = vmatpush1.bf16.msra.mxu0 %v876
    %916 = vmatprep.subr.bf16.mxu0 0
    %917 = vmatpush1.bf16.msra.mxu0 %v877
    %918 = vmatprep.subr.bf16.mxu0 0
    %919 = vmatpush1.bf16.msra.mxu0 %v878
    %920 = vmatprep.subr.bf16.mxu0 0
    %921 = vmatpush1.bf16.msra.mxu0 %v879
    %922 = vmatprep.subr.bf16.mxu0 0
    %923 = vmatpush1.bf16.msra.mxu0 %v880
    %924 = vmatprep.subr.bf16.mxu0 0
    %925 = vmatpush1.bf16.msra.mxu0 %v881
    %926 = vmatprep.subr.bf16.mxu0 0
    %927 = vmatpush1.bf16.msra.mxu0 %v882
    %928 = vmatprep.subr.bf16.mxu0 0
    %929 = vmatpush1.bf16.msra.mxu0 %v883
    %930 = vmatprep.subr.bf16.mxu0 0
    %931 = vmatpush1.bf16.msra.mxu0 %v884
    %932 = vmatprep.subr.bf16.mxu0 0
    %933 = vmatpush1.bf16.msra.mxu0 %v885
    %934 = vmatprep.mubr.bf16.mxu0 %v766
    %935 = vmatmul.mubr.bf16.gmra.mrb[0].mxu0 %v765
    %v936 = vpop.f32.mrb[0].mxu0
    %v937 = vadd.f32 %v804, %v936
    %v938 = vpop.f32.mrb[0].mxu0
    %v939 = vpop.f32.mrb[0].mxu0
    %v940 = vpop.f32.mrb[0].mxu0
    %941 = vdwg.mxu0
    %942 = vst [vmem:[#allocation7] sm:$0xff] %v937
    // Predicated region
    $region38: #{tpu_custom_call.1} parent=1 // pred_check
      _
    $region39: #{tpu_custom_call.1} parent=1 // pred_check_branch
      %944 = sbr.rel (0) target = $region41
    $region40: #{tpu_custom_call.1} parent=1 // pred_region
      %s946 = ssub.s32 128, 128
      %947 = vsyncadd [#allocation4], %s946
      %s949 = sshll.u32 [#allocation7], 4
      %s950 = int_to_ptr.vmem [resolvable:$true] %s949
      %952 = dma.vmem_to_hbm [thread:$0]  %s950, 128, %s7, [#allocation4]
    $region41: #{tpu_custom_call.1} parent=1 // pred_fallthru
      _
    // Predicated region
    $region42: #{tpu_custom_call.1} parent=1 // pred_check
      _
    $region43: #{tpu_custom_call.1} parent=1 // pred_check_branch
      %954 = sbr.rel (0) target = $region45
    $region44: #{tpu_custom_call.1} parent=1 // pred_region
      %955 = dma.done [#allocation4], 128
    $region45: #{tpu_custom_call.1} parent=1 // pred_fallthru
      _
    %956 = vsyncpa [#allocation3], 1
    %957 = vsyncpa [#allocation6], 1
    %958 = vsyncpa [#allocation4], 1

</llo_original>
